<compile_context>
chip_gen: v5e
topology: v5e:2x2
jax: 0.10.0
libtpu: 0.0.40
codegen_flags: <defaults>
</compile_context>

<pallas_src>
import functools

import jax
import jax.numpy as jnp
from jax.experimental import pallas as pl
from jax.experimental.pallas import tpu as pltpu


def _smooth_ap_kernel(xs_ref, predsT_ref, xsT_ref, blkmask_ref, sel_ref,
                      out_ref, *, half_inv_t, inv_gb):
    """One grid step == one block of classes. Writes this block's partial AP."""
    xs = xs_ref[...]          # (G, D)  this block's rows (CPB classes * g)
    pT = predsT_ref[...]      # (D, B)  full batch, transposed (lane-dense in B)
    xsT = xsT_ref[...]        # (D, G)  this block's rows, transposed
    bm = blkmask_ref[...]     # (G, G)  1.0 where row & col are in the same class
    sel = sel_ref[...]        # (g, G)  sel[j, k] = 1.0 where k % g == j

    # ---- MXU: affinities of the block's rows vs the whole batch / themselves.
    s = jnp.dot(xs, pT, preferred_element_type=jnp.float32)          # (G, B)
    sim_blk = jnp.dot(xs, xsT, preferred_element_type=jnp.float32)   # (G, G)

    # thr_t[j, r] = <x_r, x_{class(r), j}> : the positive-set affinities,
    # extracted from sim_blk with exact 0/1 selectors on the MXU (no masks on
    # big tensors, no concat/reshape/transpose, bit-consistent with `s`).
    thr_t = jnp.dot(sel, bm * sim_blk,
                    preferred_element_type=jnp.float32)              # (g, G)

    def tsig(x):
        # 1/(1+exp(-x/t)) == 0.5 + 0.5*tanh(x/(2t)); tanh saturates, so the
        # torch +-50 exponent clamp is unnecessary (no NaN/Inf path).
        return 0.5 + 0.5 * jnp.tanh(x * half_inv_t)

    # Whole-batch smoothed ranks. The reference masks out the k == "self"
    # column and adds 1; that excluded term is sigmoid(0) == 0.5 exactly, so
    # sum over all k and add 0.5 instead.  Layout (g, G, B): sublane = G,
    # lane = B, reduction over the lane axis.
    sg_all = tsig(s[None, :, :] - thr_t[:, :, None])                 # (g, G, B)
    all_rk = jnp.sum(sg_all, axis=-1) + 0.5                          # (g, G)

    # Positive-set smoothed ranks: same sigmoid(0)==0.5 identity on a tiny
    # (g, g, G) tensor (reduced axis leading => cheap vreg adds, lanes = G).
    sg_pos = tsig(thr_t[:, None, :] - thr_t[None, :, :])             # (g, g, G)
    pos_rk = jnp.sum(sg_pos, axis=0) + 0.5                           # (g, G)

    # EUP approx reciprocal + one Newton step (stays well inside the 1e-4
    # agreement with the exact-divide reference) instead of a VPU divide;
    # the 1/(g*B) scaling is a compile-time constant multiply.
    r = pl.reciprocal(all_rk, approx=True)
    r = r * (2.0 - all_rk * r)
    partial = jnp.sum(pos_rk * r) * inv_gb

    # Lane-dense per-block partial (one full 128-lane row per grid step); the
    # final 1 - sum(partials) is done in the wrapper so blocks stay
    # independent ("parallel" grid axis).
    out_ref[...] = jnp.zeros_like(out_ref) + partial


def _pick_classes_per_block(num_id, group, target_rows=256):
    """Largest divisor of num_id whose row count (d*group) fits the MXU tile
    target (~256 rows on v6e/v7x, >=128 already fine on v5e)."""
    best = 1
    for d in range(1, num_id + 1):
        if num_id % d == 0 and d * group <= target_rows:
            best = d
    return best


def smooth_ap(preds, *, anneal, num_id, classes_per_block=None):
    """preds: (batch_size, feat_dims) float32. Returns shape-(1,) float32 loss."""
    B, D = preds.shape
    assert B % num_id == 0
    g = B // num_id
    cpb = classes_per_block or _pick_classes_per_block(num_id, g)
    assert num_id % cpb == 0
    G = cpb * g
    num_blocks = num_id // cpb

    preds = preds.astype(jnp.float32)
    # Lane-dense RHS for the in-kernel matmuls (transposed once, outside the
    # kernel).  NOTE: at production sizes keep D and B multiples of 128 (pad
    # in the wrapper) so matmuls and the (.., B) element-wise tensor are
    # lane-dense.
    preds_t = preds.T                                                 # (D, B)

    # Exact 0/1 selection matrices used to pull the per-class affinities out
    # of the block Gram matrix.  They are block-local, so one copy serves
    # every grid step.
    rows = jnp.arange(G, dtype=jnp.int32)
    blkmask = (rows[:, None] // g == rows[None, :] // g).astype(jnp.float32)   # (G, G)
    sel = (rows[None, :] % g ==
           jnp.arange(g, dtype=jnp.int32)[:, None]).astype(jnp.float32)        # (g, G)

    kernel = functools.partial(_smooth_ap_kernel,
                               half_inv_t=0.5 / float(anneal),
                               inv_gb=1.0 / float(g * B))

    # TODO(synk): for very large B*D (v7x's 64 MiB VMEM), add a second
    # "arbitrary" grid axis tiling the batch (k) dimension of preds_t with a
    # VMEM running-sum scratch, and single-buffer the constant full-batch
    # block (pl.Buffered(1) / manual copy) -- the block index below never
    # changes, so it is only fetched once per grid anyway.
    partials = pl.pallas_call(
        kernel,
        out_shape=jax.ShapeDtypeStruct((num_blocks, 128), jnp.float32),
        grid_spec=pltpu.PrefetchScalarGridSpec(
            num_scalar_prefetch=0,
            grid=(num_blocks,),
            in_specs=[
                pl.BlockSpec((G, D), lambda i: (i, 0)),   # this block's rows
                pl.BlockSpec((D, B), lambda i: (0, 0)),   # full batch (constant block)
                pl.BlockSpec((D, G), lambda i: (0, i)),   # this block's rows, transposed
                pl.BlockSpec((G, G), lambda i: (0, 0)),   # class mask (constant)
                pl.BlockSpec((g, G), lambda i: (0, 0)),   # fold selector (constant)
            ],
            out_specs=pl.BlockSpec((1, 128), lambda i: (i, 0)),
        ),
        compiler_params=pltpu.CompilerParams(
            dimension_semantics=("parallel",)),
    )(preds, preds_t, preds_t, blkmask, sel)

    ap = jnp.sum(partials[:, 0])
    return (1.0 - ap).reshape((1,))


def smooth_ap_ref(preds, anneal, num_id):
    """Pure-JAX transcription of the torch forward pass, for verification."""
    B, D = preds.shape
    g = B // num_id

    def tsigmoid(x, temp):
        e = jnp.clip(-x / temp, -50.0, 50.0)
        return 1.0 / (1.0 + jnp.exp(e))

    mask = 1.0 - jnp.eye(B, dtype=jnp.float32)
    sim_all = preds @ preds.T
    sim_diff = sim_all[:, None, :] - sim_all[:, :, None]
    sim_sg = tsigmoid(sim_diff, anneal) * mask[None]
    sim_all_rk = jnp.sum(sim_sg, axis=-1) + 1.0

    xs = preds.reshape(num_id, g, D)
    pos_mask = 1.0 - jnp.eye(g, dtype=jnp.float32)
    sim_pos = jnp.einsum('cqd,cjd->cqj', xs, xs)
    sim_pos_diff = sim_pos[:, :, None, :] - sim_pos[:, :, :, None]
    sim_pos_sg = tsigmoid(sim_pos_diff, anneal) * pos_mask[None, None]
    sim_pos_rk = jnp.sum(sim_pos_sg, axis=-1) + 1.0

    ap = 0.0
    for ind in range(num_id):
        blk = sim_all_rk[ind * g:(ind + 1) * g, ind * g:(ind + 1) * g]
        ap = ap + jnp.sum(sim_pos_rk[ind] / blk) / g / B
    return 1.0 - ap


if __name__ == "__main__":
    anneal = 0.01
    batch_size = 16
    num_id = 4
    feat_dims = 32

    key = jax.random.PRNGKey(0)
    preds = jax.random.normal(key, (batch_size, feat_dims), dtype=jnp.float32)

    out = smooth_ap(preds, anneal=anneal, num_id=num_id)
    out = jax.block_until_ready(out)

    ref = smooth_ap_ref(preds, anneal, num_id)
    assert out.shape == (1,)
    assert jnp.allclose(out[0], ref, atol=1e-4, rtol=1e-4), (out, ref)
    print("KERNEL_OK")
</pallas_src>

<mosaic_0001>
module attributes {stable_mosaic.version = 11 : i64} {
  func.func @_smooth_ap_kernel(%arg0: i32, %arg1: memref<16x32xf32, #tpu.memory_space<vmem>>, %arg2: memref<32x16xf32, #tpu.memory_space<vmem>>, %arg3: memref<32x16xf32, #tpu.memory_space<vmem>>, %arg4: memref<16x16xf32, #tpu.memory_space<vmem>>, %arg5: memref<4x16xf32, #tpu.memory_space<vmem>>, %arg6: memref<1x128xf32, #tpu.memory_space<vmem>>) attributes {dimension_semantics = [#tpu.dimension_semantics<parallel>], iteration_bounds = array<i64: 1>, scalar_prefetch = 0 : i64, scratch_operands = 0 : i64, tpu.core_type = #tpu.core_type<tc>, window_params = [{transform_indices = @transform_0, window_bounds = array<i64: 16, 32>}, {pipeline_mode = #tpu.pipeline_mode<synchronous>, transform_indices = @transform_1, window_bounds = array<i64: 32, 16>}, {transform_indices = @transform_2, window_bounds = array<i64: 32, 16>}, {pipeline_mode = #tpu.pipeline_mode<synchronous>, transform_indices = @transform_3, window_bounds = array<i64: 16, 16>}, {pipeline_mode = #tpu.pipeline_mode<synchronous>, transform_indices = @transform_4, window_bounds = array<i64: 4, 16>}, {transform_indices = @transform_5, window_bounds = array<i64: 1, 128>}]} {
    %c0 = arith.constant 0 : index
    %c0_0 = arith.constant 0 : index
    %0 = vector.load %arg1[%c0, %c0_0] : memref<16x32xf32, #tpu.memory_space<vmem>>, vector<16x32xf32>
    %c0_1 = arith.constant 0 : index
    %c0_2 = arith.constant 0 : index
    %1 = vector.load %arg2[%c0_1, %c0_2] : memref<32x16xf32, #tpu.memory_space<vmem>>, vector<32x16xf32>
    %c0_3 = arith.constant 0 : index
    %c0_4 = arith.constant 0 : index
    %2 = vector.load %arg3[%c0_3, %c0_4] : memref<32x16xf32, #tpu.memory_space<vmem>>, vector<32x16xf32>
    %c0_5 = arith.constant 0 : index
    %c0_6 = arith.constant 0 : index
    %3 = vector.load %arg4[%c0_5, %c0_6] : memref<16x16xf32, #tpu.memory_space<vmem>>, vector<16x16xf32>
    %c0_7 = arith.constant 0 : index
    %c0_8 = arith.constant 0 : index
    %4 = vector.load %arg5[%c0_7, %c0_8] : memref<4x16xf32, #tpu.memory_space<vmem>>, vector<4x16xf32>
    %cst = arith.constant dense<0.000000e+00> : vector<16x16xf32>
    %5 = tpu.matmul %0, %1, %cst {dimension_numbers = #tpu.dot_dimension_numbers<[1], [0], [0], [1], [0, 0, 1, 1], [], []>} : vector<16x32xf32>, vector<32x16xf32>, vector<16x16xf32> -> vector<16x16xf32>
    %cst_9 = arith.constant dense<0.000000e+00> : vector<16x16xf32>
    %6 = tpu.matmul %0, %2, %cst_9 {dimension_numbers = #tpu.dot_dimension_numbers<[1], [0], [0], [1], [0, 0, 1, 1], [], []>} : vector<16x32xf32>, vector<32x16xf32>, vector<16x16xf32> -> vector<16x16xf32>
    %7 = arith.mulf %3, %6 : vector<16x16xf32>
    %cst_10 = arith.constant dense<0.000000e+00> : vector<4x16xf32>
    %8 = tpu.matmul %4, %7, %cst_10 {dimension_numbers = #tpu.dot_dimension_numbers<[1], [0], [0], [1], [0, 0, 1, 1], [], []>} : vector<4x16xf32>, vector<16x16xf32>, vector<4x16xf32> -> vector<4x16xf32>
    %9 = vector.shape_cast %5 : vector<16x16xf32> to vector<1x16x16xf32>
    %10 = vector.shape_cast %8 : vector<4x16xf32> to vector<4x16x1xf32>
    %11 = vector.broadcast %9 : vector<1x16x16xf32> to vector<4x16x16xf32>
    %12 = vector.broadcast %10 : vector<4x16x1xf32> to vector<4x16x16xf32>
    %13 = arith.subf %11, %12 : vector<4x16x16xf32>
    %cst_11 = arith.constant 5.000000e+01 : f32
    %14 = vector.broadcast %cst_11 : f32 to vector<4x16x16xf32>
    %15 = arith.mulf %13, %14 : vector<4x16x16xf32>
    %16 = math.tanh %15 : vector<4x16x16xf32>
    %cst_12 = arith.constant 5.000000e-01 : f32
    %17 = vector.broadcast %cst_12 : f32 to vector<4x16x16xf32>
    %18 = arith.mulf %17, %16 : vector<4x16x16xf32>
    %cst_13 = arith.constant 5.000000e-01 : f32
    %19 = vector.broadcast %cst_13 : f32 to vector<4x16x16xf32>
    %20 = arith.addf %19, %18 : vector<4x16x16xf32>
    %cst_14 = arith.constant dense<0.000000e+00> : vector<4x16xf32>
    %21 = vector.multi_reduction <add>, %20, %cst_14 [2] : vector<4x16x16xf32> to vector<4x16xf32>
    %cst_15 = arith.constant 5.000000e-01 : f32
    %22 = vector.broadcast %cst_15 : f32 to vector<4x16xf32>
    %23 = arith.addf %21, %22 : vector<4x16xf32>
    %24 = vector.shape_cast %8 : vector<4x16xf32> to vector<4x1x16xf32>
    %25 = vector.shape_cast %8 : vector<4x16xf32> to vector<1x4x16xf32>
    %26 = vector.broadcast %24 : vector<4x1x16xf32> to vector<4x4x16xf32>
    %27 = vector.broadcast %25 : vector<1x4x16xf32> to vector<4x4x16xf32>
    %28 = arith.subf %26, %27 : vector<4x4x16xf32>
    %cst_16 = arith.constant 5.000000e+01 : f32
    %29 = vector.broadcast %cst_16 : f32 to vector<4x4x16xf32>
    %30 = arith.mulf %28, %29 : vector<4x4x16xf32>
    %31 = math.tanh %30 : vector<4x4x16xf32>
    %cst_17 = arith.constant 5.000000e-01 : f32
    %32 = vector.broadcast %cst_17 : f32 to vector<4x4x16xf32>
    %33 = arith.mulf %32, %31 : vector<4x4x16xf32>
    %cst_18 = arith.constant 5.000000e-01 : f32
    %34 = vector.broadcast %cst_18 : f32 to vector<4x4x16xf32>
    %35 = arith.addf %34, %33 : vector<4x4x16xf32>
    %cst_19 = arith.constant dense<0.000000e+00> : vector<4x16xf32>
    %36 = vector.multi_reduction <add>, %35, %cst_19 [0] : vector<4x4x16xf32> to vector<4x16xf32>
    %cst_20 = arith.constant 5.000000e-01 : f32
    %37 = vector.broadcast %cst_20 : f32 to vector<4x16xf32>
    %38 = arith.addf %36, %37 : vector<4x16xf32>
    %39 = tpu.reciprocal %23 {approx = true} : vector<4x16xf32> -> vector<4x16xf32>
    %40 = arith.mulf %23, %39 : vector<4x16xf32>
    %cst_21 = arith.constant 2.000000e+00 : f32
    %41 = vector.broadcast %cst_21 : f32 to vector<4x16xf32>
    %42 = arith.subf %41, %40 : vector<4x16xf32>
    %43 = arith.mulf %39, %42 : vector<4x16xf32>
    %44 = arith.mulf %38, %43 : vector<4x16xf32>
    %45 = vector.shape_cast %44 : vector<4x16xf32> to vector<1x4x16xf32>
    %cst_22 = arith.constant dense<0.000000e+00> : vector<1xf32>
    %46 = vector.multi_reduction <add>, %45, %cst_22 [1, 2] : vector<1x4x16xf32> to vector<1xf32>
    %47 = vector.shape_cast %46 : vector<1xf32> to vector<1x1x1xf32>
    %48 = vector.extract %47[0, 0, 0] : f32 from vector<1x1x1xf32>
    %cst_23 = arith.constant 1.562500e-02 : f32
    %49 = arith.mulf %48, %cst_23 : f32
    %cst_24 = arith.constant 0.000000e+00 : f32
    %50 = vector.broadcast %cst_24 : f32 to vector<1x128xf32>
    %51 = vector.broadcast %49 : f32 to vector<1x128xf32>
    %52 = arith.addf %50, %51 : vector<1x128xf32>
    %c0_25 = arith.constant 0 : index
    %c0_26 = arith.constant 0 : index
    %53 = vector.load %arg6[%c0_25, %c0_26] : memref<1x128xf32, #tpu.memory_space<vmem>>, vector<1x128xf32>
    tpu.vector_store %arg6[%c0_25, %c0_26], %52 {strides = array<i32>} : memref<1x128xf32, #tpu.memory_space<vmem>>, vector<1x128xf32>,
    return
  }
  func.func @transform_0(%arg0: i32) -> (i32, i32) {
    %c0_i32 = arith.constant 0 : i32
    %c0_i32_0 = arith.constant 0 : i32
    return %arg0, %c0_i32 : i32, i32
  }
  func.func @transform_1(%arg0: i32) -> (i32, i32) {
    %c0_i32 = arith.constant 0 : i32
    %c0_i32_0 = arith.constant 0 : i32
    %c0_i32_1 = arith.constant 0 : i32
    return %c0_i32, %c0_i32_0 : i32, i32
  }
  func.func @transform_2(%arg0: i32) -> (i32, i32) {
    %c0_i32 = arith.constant 0 : i32
    %c0_i32_0 = arith.constant 0 : i32
    return %c0_i32, %arg0 : i32, i32
  }
  func.func @transform_3(%arg0: i32) -> (i32, i32) {
    %c0_i32 = arith.constant 0 : i32
    %c0_i32_0 = arith.constant 0 : i32
    %c0_i32_1 = arith.constant 0 : i32
    return %c0_i32, %c0_i32_0 : i32, i32
  }
  func.func @transform_4(%arg0: i32) -> (i32, i32) {
    %c0_i32 = arith.constant 0 : i32
    %c0_i32_0 = arith.constant 0 : i32
    %c0_i32_1 = arith.constant 0 : i32
    return %c0_i32, %c0_i32_0 : i32, i32
  }
  func.func @transform_5(%arg0: i32) -> (i32, i32) {
    %c0_i32 = arith.constant 0 : i32
    %c0_i32_0 = arith.constant 0 : i32
    return %arg0, %c0_i32 : i32, i32
  }
}

</mosaic_0001>

<llo_original>
// kernel: tpu_custom_call.1
$region0: #{tpu_custom_call.1}
  #allocation0 [shape = 'u32[]', space=smem, size = 0x4, offset = 0x4, fixed_abs, tag = 'smem constant byte address 0x4 - core index']
  #allocation1 [shape = 'u32[72,128]{1,0:T(1,128)}', space=vmem, size = 0x9000, scoped, tag = 'internal scratch']
  %s0 = inlined_call_operand.vmem [shape: f32[16,32], index: 0, kind: input, shape index: {}]
  %s1 = inlined_call_operand.vmem [shape: f32[32,16], index: 1, kind: input, shape index: {}]
  %s2 = inlined_call_operand.vmem [shape: f32[32,16], index: 2, kind: input, shape index: {}]
  %s3 = inlined_call_operand.vmem [shape: f32[16,16], index: 3, kind: input, shape index: {}]
  %s4 = inlined_call_operand.vmem [shape: f32[4,16], index: 4, kind: input, shape index: {}]
  %s5 = inlined_call_operand.hbm [shape: f32[1,128], index: 5, kind: output, shape index: {}]
  %s6 = sld [smem:[#allocation0]]
  $region30: #{tpu_custom_call.1} parent=0
    _
  %s8 = ssub.s32 1, %s6
  %s9 = scalar_select 0, %s8, %s6
  $region1: #{tpu_custom_call.1} parent=0
    #allocation2 [shape = 'u8[512]{0}', space=vmem, size = 0x400, scoped, tag = 'output window, operand 0, single buffered']
    #allocation3 [shape = 's32[1]{0}', space=sflag, size = 0x4, scoped, tag = 'scoped memory for tpu_custom_call.1']
    %10 = vsyncpa [#allocation3], 0
    // Predicated region
    $region2: #{tpu_custom_call.1} parent=1 // pred_check
      _
    $region3: #{tpu_custom_call.1} parent=1 // pred_check_branch
      %12 = sbr.rel (0) target = $region5
    $region4: #{tpu_custom_call.1} parent=1 // pred_region
      _
    $region5: #{tpu_custom_call.1} parent=1 // pred_fallthru
      _
    // Predicated region
    $region6: #{tpu_custom_call.1} parent=1 // pred_check
      _
    $region7: #{tpu_custom_call.1} parent=1 // pred_check_branch
      %14 = sbr.rel (0) target = $region9
    $region8: #{tpu_custom_call.1} parent=1 // pred_region
      _
    $region9: #{tpu_custom_call.1} parent=1 // pred_fallthru
      _
    // Predicated region
    $region10: #{tpu_custom_call.1} parent=1 // pred_check
      _
    $region11: #{tpu_custom_call.1} parent=1 // pred_check_branch
      %16 = sbr.rel (0) target = $region13
    $region12: #{tpu_custom_call.1} parent=1 // pred_region
      _
    $region13: #{tpu_custom_call.1} parent=1 // pred_fallthru
      _
    // Predicated region
    $region14: #{tpu_custom_call.1} parent=1 // pred_check
      _
    $region15: #{tpu_custom_call.1} parent=1 // pred_check_branch
      %18 = sbr.rel (0) target = $region17
    $region16: #{tpu_custom_call.1} parent=1 // pred_region
      _
    $region17: #{tpu_custom_call.1} parent=1 // pred_fallthru
      _
    // Predicated region
    $region18: #{tpu_custom_call.1} parent=1 // pred_check
      _
    $region19: #{tpu_custom_call.1} parent=1 // pred_check_branch
      %20 = sbr.rel (0) target = $region21
    $region20: #{tpu_custom_call.1} parent=1 // pred_region
      _
    $region21: #{tpu_custom_call.1} parent=1 // pred_fallthru
      _
    %v21 = vld [vmem:[%s0] sm:$0xff]
    %v22 = vld [vmem:[%s0 + $0x8] sm:$0xff]
    %v23 = vld [vmem:[%s1] sm:$0xff]
    %v24 = vld [vmem:[%s1 + $0x8] sm:$0xff]
    %v25 = vld [vmem:[%s1 + $0x10] sm:$0xff]
    %v26 = vld [vmem:[%s1 + $0x18] sm:$0xff]
    %v27 = vld [vmem:[%s2] sm:$0xff]
    %v28 = vld [vmem:[%s2 + $0x8] sm:$0xff]
    %v29 = vld [vmem:[%s2 + $0x10] sm:$0xff]
    %v30 = vld [vmem:[%s2 + $0x18] sm:$0xff]
    %v31 = vld [vmem:[%s3] sm:$0xff]
    %v32 = vld [vmem:[%s3 + $0x8] sm:$0xff]
    %v33 = vld [vmem:[%s4] sm:$0xf]
    %vm34 = vcmask 261120
    %v36 = vsel %vm34, %v21, 0
    %v39 = vsel %vm34, %v22, 0
    %41 = vmatpush.msra.mxu0 0.0
    %42 = vmatpush.msra.mxu0 0.0
    %43 = vmatpush.msra.mxu0 0.0
    %44 = vmatpush.msra.mxu0 0.0
    %45 = vmatpush.msra.mxu0 0.0
    %46 = vmatpush.msra.mxu0 0.0
    %47 = vmatpush.msra.mxu0 0.0
    %48 = vmatpush.msra.mxu0 0.0
    %49 = vmatpush.msra.mxu0 0.0
    %50 = vmatpush.msra.mxu0 0.0
    %51 = vmatpush.msra.mxu0 0.0
    %52 = vmatpush.msra.mxu0 0.0
    %53 = vmatpush.msra.mxu0 %v26
    %54 = vmatpush.msra.mxu0 %v25
    %55 = vmatpush.msra.mxu0 %v24
    %56 = vmatpush.msra.mxu0 %v23
    %57 = vmatmul.f32.gmra.mxu0 %v36
    %v58 = vpop.f32.mrf.mxu0
    %v59 = vadd.f32 0.0, %v58
    %60 = vmatmul.f32.gmra.mxu0 %v39
    %v61 = vpop.f32.mrf.mxu0
    %v62 = vadd.f32 0.0, %v61
    %63 = vdwg.mxu0
    %64 = vmatpush.msra.mxu0 0.0
    %65 = vmatpush.msra.mxu0 0.0
    %66 = vmatpush.msra.mxu0 0.0
    %67 = vmatpush.msra.mxu0 0.0
    %68 = vmatpush.msra.mxu0 0.0
    %69 = vmatpush.msra.mxu0 0.0
    %70 = vmatpush.msra.mxu0 0.0
    %71 = vmatpush.msra.mxu0 0.0
    %72 = vmatpush.msra.mxu0 0.0
    %73 = vmatpush.msra.mxu0 0.0
    %74 = vmatpush.msra.mxu0 0.0
    %75 = vmatpush.msra.mxu0 0.0
    %76 = vmatpush.msra.mxu0 %v30
    %77 = vmatpush.msra.mxu0 %v29
    %78 = vmatpush.msra.mxu0 %v28
    %79 = vmatpush.msra.mxu0 %v27
    %80 = vmatmul.f32.gmra.mxu0 %v36
    %v81 = vpop.f32.mrf.mxu0
    %v82 = vadd.f32 0.0, %v81
    %83 = vmatmul.f32.gmra.mxu0 %v39
    %v84 = vpop.f32.mrf.mxu0
    %v85 = vadd.f32 0.0, %v84
    %86 = vdwg.mxu0
    %v87 = vmul.f32 %v31, %v82
    %v88 = vmul.f32 %v32, %v85
    %vm89 = vcmask 130048
    %v91 = vsel %vm89, %v33, 0
    %93 = vmatpush.msra.mxu0 0.0
    %94 = vmatpush.msra.mxu0 0.0
    %95 = vmatpush.msra.mxu0 0.0
    %96 = vmatpush.msra.mxu0 0.0
    %97 = vmatpush.msra.mxu0 0.0
    %98 = vmatpush.msra.mxu0 0.0
    %99 = vmatpush.msra.mxu0 0.0
    %100 = vmatpush.msra.mxu0 0.0
    %101 = vmatpush.msra.mxu0 0.0
    %102 = vmatpush.msra.mxu0 0.0
    %103 = vmatpush.msra.mxu0 0.0
    %104 = vmatpush.msra.mxu0 0.0
    %105 = vmatpush.msra.mxu0 0.0
    %106 = vmatpush.msra.mxu0 0.0
    %107 = vmatpush.msra.mxu0 %v88
    %108 = vmatpush.msra.mxu0 %v87
    %109 = vmatmul.f32.gmra.mxu0 %v91
    %v110 = vpop.f32.mrf.mxu0
    %v111 = vadd.f32 0.0, %v110
    %112 = vdwg.mxu0
    %v113 = vperm.slane %v111, 0
    %v114 = vlaneseq
    %v115 = vshrl.u32 %v114, 7
    %117 = vset.pattern.permute.xlu0 %v115
    %118 = vperm.xlu0 %117, %v113
    %v119 = vpop.permute.xlu0 %118
    %v120 = vlaneseq
    %v121 = vshrl.u32 %v120, 7
    %v122 = vadd.s32 %v121, 8
    %123 = vset.pattern.permute.xlu0 %v122
    %124 = vperm.xlu0 %123, %v113
    %v125 = vpop.permute.xlu0 %124
    %v126 = vperm.slane %v111, 1
    %v127 = vlaneseq
    %v128 = vshrl.u32 %v127, 7
    %130 = vset.pattern.permute.xlu0 %v128
    %131 = vperm.xlu0 %130, %v126
    %v132 = vpop.permute.xlu0 %131
    %v133 = vlaneseq
    %v134 = vshrl.u32 %v133, 7
    %v135 = vadd.s32 %v134, 8
    %136 = vset.pattern.permute.xlu0 %v135
    %137 = vperm.xlu0 %136, %v126
    %v138 = vpop.permute.xlu0 %137
    %v139 = vperm.slane %v111, 2
    %v140 = vlaneseq
    %v141 = vshrl.u32 %v140, 7
    %143 = vset.pattern.permute.xlu0 %v141
    %144 = vperm.xlu0 %143, %v139
    %v145 = vpop.permute.xlu0 %144
    %v146 = vlaneseq
    %v147 = vshrl.u32 %v146, 7
    %v148 = vadd.s32 %v147, 8
    %149 = vset.pattern.permute.xlu0 %v148
    %150 = vperm.xlu0 %149, %v139
    %v151 = vpop.permute.xlu0 %150
    %v152 = vperm.slane %v111, 3
    %v153 = vlaneseq
    %v154 = vshrl.u32 %v153, 7
    %156 = vset.pattern.permute.xlu0 %v154
    %157 = vperm.xlu0 %156, %v152
    %v158 = vpop.permute.xlu0 %157
    %v159 = vlaneseq
    %v160 = vshrl.u32 %v159, 7
    %v161 = vadd.s32 %v160, 8
    %162 = vset.pattern.permute.xlu0 %v161
    %163 = vperm.xlu0 %162, %v152
    %v164 = vpop.permute.xlu0 %163
    %v165 = vsub.f32 %v59, %v119
    %v166 = vsub.f32 %v62, %v125
    %v167 = vsub.f32 %v59, %v132
    %v168 = vsub.f32 %v62, %v138
    %v169 = vsub.f32 %v59, %v145
    %v170 = vsub.f32 %v62, %v151
    %v171 = vsub.f32 %v59, %v158
    %v172 = vsub.f32 %v62, %v164
    %v173 = vmul.f32 %v165, 50.0
    %v174 = vmul.f32 %v166, 50.0
    %v175 = vmul.f32 %v167, 50.0
    %v176 = vmul.f32 %v168, 50.0
    %v177 = vmul.f32 %v169, 50.0
    %v178 = vmul.f32 %v170, 50.0
    %v179 = vmul.f32 %v171, 50.0
    %v180 = vmul.f32 %v172, 50.0
    %v181 = vtanh.pop %v173
    %v182 = vtanh.pop %v174
    %v183 = vtanh.pop %v175
    %v184 = vtanh.pop %v176
    %v185 = vtanh.pop %v177
    %v186 = vtanh.pop %v178
    %v187 = vtanh.pop %v179
    %v188 = vtanh.pop %v180
    %v189 = vmul.f32 %v181, 0.5
    %v190 = vmul.f32 %v182, 0.5
    %v191 = vmul.f32 %v183, 0.5
    %v192 = vmul.f32 %v184, 0.5
    %v193 = vmul.f32 %v185, 0.5
    %v194 = vmul.f32 %v186, 0.5
    %v195 = vmul.f32 %v187, 0.5
    %v196 = vmul.f32 %v188, 0.5
    %v197 = vadd.f32 %v189, 0.5
    %v198 = vadd.f32 %v190, 0.5
    %v199 = vadd.f32 %v191, 0.5
    %v200 = vadd.f32 %v192, 0.5
    %v201 = vadd.f32 %v193, 0.5
    %v202 = vadd.f32 %v194, 0.5
    %v203 = vadd.f32 %v195, 0.5
    %v204 = vadd.f32 %v196, 0.5
    %v205 = vsel %vm89, %v197, 0.0
    %206 = vadd.xlane.f32.xlu0 %v205
    %v207 = vpop.xlane.xlu0 %206
    %v208 = vsel %vm89, %v198, 0.0
    %209 = vadd.xlane.f32.xlu0 %v208
    %v210 = vpop.xlane.xlu0 %209
    %v211 = vsel %vm89, %v199, 0.0
    %212 = vadd.xlane.f32.xlu0 %v211
    %v213 = vpop.xlane.xlu0 %212
    %v214 = vsel %vm89, %v200, 0.0
    %215 = vadd.xlane.f32.xlu0 %v214
    %v216 = vpop.xlane.xlu0 %215
    %v217 = vsel %vm89, %v201, 0.0
    %218 = vadd.xlane.f32.xlu0 %v217
    %v219 = vpop.xlane.xlu0 %218
    %v220 = vsel %vm89, %v202, 0.0
    %221 = vadd.xlane.f32.xlu0 %v220
    %v222 = vpop.xlane.xlu0 %221
    %v223 = vsel %vm89, %v203, 0.0
    %224 = vadd.xlane.f32.xlu0 %v223
    %v225 = vpop.xlane.xlu0 %224
    %v226 = vsel %vm89, %v204, 0.0
    %227 = vadd.xlane.f32.xlu0 %v226
    %v228 = vpop.xlane.xlu0 %227
    %v229 = vadd.f32 %v207, 0.5
    %v230 = vadd.f32 %v210, 0.5
    %v231 = vadd.f32 %v213, 0.5
    %v232 = vadd.f32 %v216, 0.5
    %v233 = vadd.f32 %v219, 0.5
    %v234 = vadd.f32 %v222, 0.5
    %v235 = vadd.f32 %v225, 0.5
    %v236 = vadd.f32 %v228, 0.5
    %v238 = vrot.slane %v111, 1
    %v239 = vrot.slane %v111, 2
    %v240 = vrot.slane %v111, 3
    %v241 = vperm.slane %v111, 0
    %v242 = vperm.slane %v238, 0
    %v243 = vperm.slane %v239, 0
    %v244 = vperm.slane %v240, 0
    %v249 = vsub.f32 %v241, %v111
    %v250 = vsub.f32 %v242, %v111
    %v251 = vsub.f32 %v243, %v111
    %v252 = vsub.f32 %v244, %v111
    %v253 = vmul.f32 %v249, 50.0
    %v254 = vmul.f32 %v250, 50.0
    %v255 = vmul.f32 %v251, 50.0
    %v256 = vmul.f32 %v252, 50.0
    %v257 = vtanh.pop %v253
    %v258 = vtanh.pop %v254
    %v259 = vtanh.pop %v255
    %v260 = vtanh.pop %v256
    %v261 = vmul.f32 %v257, 0.5
    %v262 = vmul.f32 %v258, 0.5
    %v263 = vmul.f32 %v259, 0.5
    %v264 = vmul.f32 %v260, 0.5
    %v265 = vadd.f32 %v261, 0.5
    %v266 = vadd.f32 %v262, 0.5
    %v267 = vadd.f32 %v263, 0.5
    %v268 = vadd.f32 %v264, 0.5
    %vm269 = vcmask 125952
    %v270 = vsel %vm269, %v265, 0.0
    %v271 = vsel %vm269, %v266, 0.0
    %v272 = vadd.f32 %v270, %v271
    %v273 = vsel %vm269, %v267, 0.0
    %v274 = vadd.f32 %v272, %v273
    %v275 = vsel %vm269, %v268, 0.0
    %v276 = vadd.f32 %v274, %v275
    %v277 = vadd.f32 %v276, 0.5
    %v278 = vrcp.pop %v229
    %v279 = vrcp.pop %v230
    %v280 = vrcp.pop %v231
    %v281 = vrcp.pop %v232
    %v282 = vrcp.pop %v233
    %v283 = vrcp.pop %v234
    %v284 = vrcp.pop %v235
    %v285 = vrcp.pop %v236
    %v286 = vmul.f32 %v229, %v278
    %v287 = vmul.f32 %v230, %v279
    %v288 = vmul.f32 %v231, %v280
    %v289 = vmul.f32 %v232, %v281
    %v290 = vmul.f32 %v233, %v282
    %v291 = vmul.f32 %v234, %v283
    %v292 = vmul.f32 %v235, %v284
    %v293 = vmul.f32 %v236, %v285
    %v294 = vsub.f32 2.0, %v286
    %v295 = vsub.f32 2.0, %v287
    %v296 = vsub.f32 2.0, %v288
    %v297 = vsub.f32 2.0, %v289
    %v298 = vsub.f32 2.0, %v290
    %v299 = vsub.f32 2.0, %v291
    %v300 = vsub.f32 2.0, %v292
    %v301 = vsub.f32 2.0, %v293
    %v302 = vmul.f32 %v278, %v294
    %v303 = vmul.f32 %v279, %v295
    %v304 = vmul.f32 %v280, %v296
    %v305 = vmul.f32 %v281, %v297
    %v306 = vmul.f32 %v282, %v298
    %v307 = vmul.f32 %v283, %v299
    %v308 = vmul.f32 %v284, %v300
    %v309 = vmul.f32 %v285, %v301
    %v318 = vlaneseq
    %v319 = vand.u32 %v318, 127
    %v320 = vperm.slane %v302, %v319
    %v321 = vadd.s32 %v319, 4294967288
    %v322 = vperm.slane %v303, %v321
    %vm323 = vcmask 130112
    %v324 = vsel %vm323, %v322, %v320
    %v325 = vperm.slane %v304, %v319
    %v326 = vperm.slane %v305, %v321
    %v327 = vsel %vm323, %v326, %v325
    %v328 = vperm.slane %v306, %v319
    %v329 = vperm.slane %v307, %v321
    %v330 = vsel %vm323, %v329, %v328
    %v331 = vperm.slane %v308, %v319
    %v332 = vperm.slane %v309, %v321
    %v333 = vsel %vm323, %v332, %v331
    %vm334 = vcmask 1041409
    %v335 = vsel %vm334, %v327, %v324
    %vm336 = vcmask 1042434
    %v337 = vsel %vm336, %v330, %v335
    %vm338 = vcmask 1043459
    %v339 = vsel %vm338, %v333, %v337
    %v341 = vmul.f32 %v277, %v339
    %v342 = vsel %vm269, %v341, 0.0
    %343 = vadd.xlane.f32.xlu0 %v342
    %v344 = vpop.xlane.xlu0 %343
    %v345 = vrot.slane %v344, 4
    %v346 = vadd.f32 %v344, %v345
    %v347 = vrot.slane %v346, 2
    %v348 = vadd.f32 %v346, %v347
    %v349 = vrot.slane %v348, 1
    %v350 = vadd.f32 %v348, %v349
    %s351 = vtos %v350
    %s352 = smul.f32 %s351, 0.015625
    %v353 = vstv %s352
    %v354 = vadd.f32 %v353, 0.0
    %355 = vst [vmem:[#allocation2] sm:$0x1] %v354
    // Predicated region
    $region22: #{tpu_custom_call.1} parent=1 // pred_check
      _
    $region23: #{tpu_custom_call.1} parent=1 // pred_check_branch
      %357 = sbr.rel (0) target = $region25
    $region24: #{tpu_custom_call.1} parent=1 // pred_region
      %359 = vsyncadd [#allocation3], 0
      %s361 = sshll.u32 [#allocation2], 4
      %s362 = int_to_ptr.vmem [resolvable:$true] %s361
      %s363 = sshll.u32 %s5, 4
      %s364 = int_to_ptr.hbm [resolvable:$true] %s363
      %366 = dma.vmem_to_hbm [thread:$0]  %s362, 16, %s364, [#allocation3]
    $region25: #{tpu_custom_call.1} parent=1 // pred_fallthru
      _
    // Predicated region
    $region26: #{tpu_custom_call.1} parent=1 // pred_check
      _
    $region27: #{tpu_custom_call.1} parent=1 // pred_check_branch
      %368 = sbr.rel (0) target = $region29
    $region28: #{tpu_custom_call.1} parent=1 // pred_region
      %370 = dma.done [#allocation3], 16
    $region29: #{tpu_custom_call.1} parent=1 // pred_fallthru
      _
    %371 = vsyncpa [#allocation3], 1

</llo_original>
